<compile_context>
chip_gen: v7x
topology: tpu7x:2x2x1
jax: 0.10.0
libtpu: 0.0.40
codegen_flags: <defaults>
</compile_context>

<pallas_src>
import jax
import jax.numpy as jnp
from jax.experimental import pallas as pl
from jax.experimental.pallas import tpu as pltpu


def _add_kernel(a_ref, b_ref, o_ref):
    o_ref[...] = a_ref[...] + b_ref[...]


_SUBLANE_FOR_ITEMSIZE = {4: 8, 2: 16, 1: 32}
_PALLAS_MIN_BYTES = 64 * 1024        # below this, XLA's fused add wins
_SPLIT_MIN_BYTES = 4 * 1024 * 1024   # only split a single-block array if >= this


def _generation_budget():
    """Returns (target block bytes per operand, scoped vmem_limit_bytes)."""
    cap = None
    try:
        info = pltpu.get_tpu_info()
        cap = getattr(info, "vmem_capacity_bytes", None)
    except Exception:
        cap = None
    if cap is not None and cap >= (100 << 20):
        # v5e / v6e: 128 MiB physical VMEM -> fat blocks, generous limit.
        return 8 << 20, 64 << 20
    # v7x (64 MiB per TensorCore) or unknown: conservative but still large.
    return 6 << 20, 48 << 20


def _pick_lane_width(n_elem):
    """Widest lane-dense last dim (multiple of 128) that divides n_elem."""
    for w in (2048, 1024, 512, 256, 128):
        if n_elem % w == 0:
            return w
    return None


def _pick_block_rows(rows, width, itemsize, sublane, target_block_bytes):
    """Block row count: ~target bytes per operand, sublane-aligned, balanced."""
    row_bytes = width * itemsize
    target_br = max(sublane, (target_block_bytes // row_bytes) // sublane * sublane)

    if target_br >= rows:
        # Whole array fits in a single block.  Split into two EQUAL blocks only
        # when the split is perfectly balanced and the array is big enough to
        # benefit the 2-TensorCore (v7x) path; otherwise one full-extent block.
        if rows % (2 * sublane) == 0 and rows * row_bytes >= _SPLIT_MIN_BYTES:
            return rows // 2
        return rows

    # Many-step case: nudge the grid step count to be even (2 TCs on v7x).
    g = pl.cdiv(rows, target_br)
    if g % 2:
        g += 1
    br = pl.cdiv(rows, g)
    br = pl.cdiv(br, sublane) * sublane
    return br


def layered_forward(x: jax.Array, stored_x: jax.Array, *,
                    force_pallas: bool = False,
                    donate_x: bool = False,
                    _block_bytes_override: int | None = None) -> jax.Array:
    """Layered.forward: returns x + stored_x."""
    if x.shape != stored_x.shape or x.dtype != stored_x.dtype:
        # TODO(synk): broadcasting / type-promotion path is left to XLA's fused add.
        return x + stored_x

    n_elem = x.size
    itemsize = jnp.dtype(x.dtype).itemsize
    nbytes = n_elem * itemsize
    width = _pick_lane_width(n_elem)

    if width is None or (nbytes < _PALLAS_MIN_BYTES and not force_pallas):
        # Odd element counts or tiny tensors: XLA's fused add already hits the
        # HBM roofline; pallas_call fixed overhead would dominate.
        # TODO(synk): bulk+tail Pallas split for non-128-divisible counts.
        return x + stored_x

    target_block_bytes, vmem_limit = _generation_budget()
    if _block_bytes_override is not None:
        target_block_bytes = _block_bytes_override

    rows = n_elem // width
    sublane = _SUBLANE_FOR_ITEMSIZE.get(itemsize, 8)
    block_rows = _pick_block_rows(rows, width, itemsize, sublane, target_block_bytes)
    grid = (pl.cdiv(rows, block_rows),)

    # JAX arrays at the call boundary are dense row-major, so these reshapes
    # are layout-preserving bitcasts (no extra HBM traffic).
    x2 = x.reshape(rows, width)
    s2 = stored_x.reshape(rows, width)

    call_kwargs = {}
    if donate_x:
        # Alias x into the output: same bytes moved, but no separate HBM
        # output allocation / copy-insertion around the custom call.
        call_kwargs["input_output_aliases"] = {0: 0}

    out2 = pl.pallas_call(
        _add_kernel,
        out_shape=jax.ShapeDtypeStruct((rows, width), x.dtype),
        grid_spec=pltpu.PrefetchScalarGridSpec(
            num_scalar_prefetch=0,
            grid=grid,
            in_specs=[
                pl.BlockSpec((block_rows, width), lambda i: (i, 0)),
                pl.BlockSpec((block_rows, width), lambda i: (i, 0)),
            ],
            out_specs=pl.BlockSpec((block_rows, width), lambda i: (i, 0)),
        ),
        compiler_params=pltpu.CompilerParams(
            dimension_semantics=("parallel",),
            vmem_limit_bytes=vmem_limit,
        ),
        **call_kwargs,
    )(x2, s2)

    return out2.reshape(x.shape)


if __name__ == "__main__":
    key = jax.random.PRNGKey(0)
    k1, k2, k3, k4, k5, k6 = jax.random.split(key, 6)

    # 1) Small NCHW case matching the module's usage; force the Pallas path so
    #    the kernel itself is exercised even at this tiny size.
    shape = (2, 4, 16, 16)
    stored = jax.random.normal(k1, shape, dtype=jnp.float32)   # "self.x" from __init__
    x = jax.random.normal(k2, shape, dtype=jnp.float32)        # forward input
    out = jax.block_until_ready(layered_forward(x, stored, force_pallas=True))
    ref = x + stored
    assert out.shape == ref.shape and out.dtype == ref.dtype
    assert jnp.allclose(out, ref, atol=1e-6), "f32 small-case mismatch vs reference"

    # 2) Multi-step grid with a ragged trailing block: block size overridden so
    #    the tiling / even-grid / masking logic is exercised at a small shape.
    shape2 = (2, 4, 80, 64)                       # 40960 elems -> rows=20, width=2048
    stored2 = jax.random.normal(k3, shape2, dtype=jnp.float32)
    x2 = jax.random.normal(k4, shape2, dtype=jnp.float32)
    out2 = jax.block_until_ready(
        layered_forward(x2, stored2, _block_bytes_override=64 * 1024))
    assert jnp.allclose(out2, x2 + stored2, atol=1e-6), "f32 multi-step grid mismatch"

    # 3) bf16 case: checks the dtype-aware (16, 128) sublane alignment.
    shape3 = (4, 8, 32, 32)
    stored3 = jax.random.normal(k5, shape3, dtype=jnp.bfloat16)
    x3 = jax.random.normal(k6, shape3, dtype=jnp.bfloat16)
    out3 = jax.block_until_ready(layered_forward(x3, stored3, force_pallas=True))
    assert jnp.allclose(out3.astype(jnp.float32),
                        (x3 + stored3).astype(jnp.float32)), "bf16 case mismatch"

    print("KERNEL_OK")
</pallas_src>

<mosaic_0001>
module attributes {stable_mosaic.version = 11 : i64} {
  func.func @_add_kernel(%arg0: i32, %arg1: memref<1x2048xf32, #tpu.memory_space<vmem>>, %arg2: memref<1x2048xf32, #tpu.memory_space<vmem>>, %arg3: memref<1x2048xf32, #tpu.memory_space<vmem>>) attributes {dimension_semantics = [#tpu.dimension_semantics<parallel>], iteration_bounds = array<i64: 1>, scalar_prefetch = 0 : i64, scratch_operands = 0 : i64, tpu.core_type = #tpu.core_type<tc>, window_params = [{transform_indices = @transform_0, window_bounds = array<i64: 1, 2048>}, {transform_indices = @transform_1, window_bounds = array<i64: 1, 2048>}, {transform_indices = @transform_2, window_bounds = array<i64: 1, 2048>}]} {
    %c0 = arith.constant 0 : index
    %c0_0 = arith.constant 0 : index
    %0 = vector.load %arg1[%c0, %c0_0] : memref<1x2048xf32, #tpu.memory_space<vmem>>, vector<1x2048xf32>
    %c0_1 = arith.constant 0 : index
    %c0_2 = arith.constant 0 : index
    %1 = vector.load %arg2[%c0_1, %c0_2] : memref<1x2048xf32, #tpu.memory_space<vmem>>, vector<1x2048xf32>
    %2 = arith.addf %0, %1 : vector<1x2048xf32>
    %c0_3 = arith.constant 0 : index
    %c0_4 = arith.constant 0 : index
    %3 = vector.load %arg3[%c0_3, %c0_4] : memref<1x2048xf32, #tpu.memory_space<vmem>>, vector<1x2048xf32>
    tpu.vector_store %arg3[%c0_3, %c0_4], %2 {strides = array<i32>} : memref<1x2048xf32, #tpu.memory_space<vmem>>, vector<1x2048xf32>,
    return
  }
  func.func @transform_0(%arg0: i32) -> (i32, i32) {
    %c0_i32 = arith.constant 0 : i32
    %c0_i32_0 = arith.constant 0 : i32
    return %arg0, %c0_i32 : i32, i32
  }
  func.func @transform_1(%arg0: i32) -> (i32, i32) {
    %c0_i32 = arith.constant 0 : i32
    %c0_i32_0 = arith.constant 0 : i32
    return %arg0, %c0_i32 : i32, i32
  }
  func.func @transform_2(%arg0: i32) -> (i32, i32) {
    %c0_i32 = arith.constant 0 : i32
    %c0_i32_0 = arith.constant 0 : i32
    return %arg0, %c0_i32 : i32, i32
  }
}

</mosaic_0001>

<llo_original>
// kernel: tpu_custom_call.1
$region0: #{tpu_custom_call.1}
  #allocation0 [shape = 'u32[]', space=smem, size = 0x4, offset = 0x4, fixed_abs, tag = 'smem constant byte address 0x4 - core index']
  #allocation1 [shape = 'u32[144,128]{1,0:T(1,128)}', space=vmem, size = 0x12000, scoped, tag = 'internal scratch']
  %s0 = inlined_call_operand.hbm [shape: f32[1,2048], index: 0, kind: input, shape index: {}]
  %s1 = inlined_call_operand.hbm [shape: f32[1,2048], index: 1, kind: input, shape index: {}]
  %s2 = inlined_call_operand.hbm [shape: f32[1,2048], index: 2, kind: output, shape index: {}]
  %s3 = sld [smem:[#allocation0]]
  $region26: #{tpu_custom_call.1} parent=0
    _
  %s5 = ssub.s32 1, %s3
  %s6 = scalar_select 0, %s5, %s3
  $region1: #{tpu_custom_call.1} parent=0
    #allocation2 [shape = 'u8[8192]{0}', space=vmem, size = 0x2000, scoped, tag = 'input window, operand 0, single buffered']
    #allocation3 [shape = 's32[1]{0}', space=sflag, size = 0x4, scoped, tag = 'scoped memory for tpu_custom_call.1']
    #allocation4 [shape = 's32[1]{0}', space=sflag, size = 0x4, scoped, tag = 'scoped memory for tpu_custom_call.1']
    #allocation5 [shape = 'u8[8192]{0}', space=vmem, size = 0x2000, scoped, tag = 'input window, operand 1, single buffered']
    #allocation6 [shape = 's32[1]{0}', space=sflag, size = 0x4, scoped, tag = 'scoped memory for tpu_custom_call.1']
    #allocation7 [shape = 'u8[8192]{0}', space=vmem, size = 0x2000, scoped, tag = 'output window, operand 0, single buffered']
    %7 = vsyncpa [#allocation3], 0
    %8 = vsyncpa [#allocation6], 0
    %9 = vsyncpa [#allocation4], 0
    // Predicated region
    $region2: #{tpu_custom_call.1} parent=1 // pred_check
      _
    $region3: #{tpu_custom_call.1} parent=1 // pred_check_branch
      %11 = sbr.rel (0) target = $region5
    $region4: #{tpu_custom_call.1} parent=1 // pred_region
      %s13 = ssub.s32 256, 256
      %14 = vsyncadd [#allocation3], %s13
      %s16 = sshll.u32 [#allocation2], 4
      %s17 = int_to_ptr.vmem [resolvable:$true] %s16
      %19 = dma.hbm_to_vmem [thread:$0]  %s0, 256, %s17, [#allocation3]
    $region5: #{tpu_custom_call.1} parent=1 // pred_fallthru
      _
    // Predicated region
    $region6: #{tpu_custom_call.1} parent=1 // pred_check
      _
    $region7: #{tpu_custom_call.1} parent=1 // pred_check_branch
      %21 = sbr.rel (0) target = $region9
    $region8: #{tpu_custom_call.1} parent=1 // pred_region
      %s23 = ssub.s32 256, 256
      %24 = vsyncadd [#allocation6], %s23
      %s26 = sshll.u32 [#allocation5], 4
      %s27 = int_to_ptr.vmem [resolvable:$true] %s26
      %29 = dma.hbm_to_vmem [thread:$0]  %s1, 256, %s27, [#allocation6]
    $region9: #{tpu_custom_call.1} parent=1 // pred_fallthru
      _
    // Predicated region
    $region10: #{tpu_custom_call.1} parent=1 // pred_check
      _
    $region11: #{tpu_custom_call.1} parent=1 // pred_check_branch
      %31 = sbr.rel (0) target = $region13
    $region12: #{tpu_custom_call.1} parent=1 // pred_region
      %32 = dma.done [#allocation3], 256
    $region13: #{tpu_custom_call.1} parent=1 // pred_fallthru
      _
    // Predicated region
    $region14: #{tpu_custom_call.1} parent=1 // pred_check
      _
    $region15: #{tpu_custom_call.1} parent=1 // pred_check_branch
      %34 = sbr.rel (0) target = $region17
    $region16: #{tpu_custom_call.1} parent=1 // pred_region
      %35 = dma.done [#allocation6], 256
    $region17: #{tpu_custom_call.1} parent=1 // pred_fallthru
      _
    %v36 = vld [vmem:[#allocation2] sm:$0xff]
    %v37 = vld [vmem:[#allocation2 + $0x8] sm:$0xff]
    %v38 = vld [vmem:[#allocation5] sm:$0xff]
    %v39 = vld [vmem:[#allocation5 + $0x8] sm:$0xff]
    %v40 = vadd.f32 %v36, %v38
    %v41 = vadd.f32 %v37, %v39
    %42 = vst [vmem:[#allocation7] sm:$0xff] %v40
    %43 = vst [vmem:[#allocation7 + $0x8] sm:$0xff] %v41
    // Predicated region
    $region18: #{tpu_custom_call.1} parent=1 // pred_check
      _
    $region19: #{tpu_custom_call.1} parent=1 // pred_check_branch
      %45 = sbr.rel (0) target = $region21
    $region20: #{tpu_custom_call.1} parent=1 // pred_region
      %s47 = ssub.s32 256, 256
      %48 = vsyncadd [#allocation4], %s47
      %s50 = sshll.u32 [#allocation7], 4
      %s51 = int_to_ptr.vmem [resolvable:$true] %s50
      %53 = dma.vmem_to_hbm [thread:$0]  %s51, 256, %s2, [#allocation4]
    $region21: #{tpu_custom_call.1} parent=1 // pred_fallthru
      _
    // Predicated region
    $region22: #{tpu_custom_call.1} parent=1 // pred_check
      _
    $region23: #{tpu_custom_call.1} parent=1 // pred_check_branch
      %55 = sbr.rel (0) target = $region25
    $region24: #{tpu_custom_call.1} parent=1 // pred_region
      %56 = dma.done [#allocation4], 256
    $region25: #{tpu_custom_call.1} parent=1 // pred_fallthru
      _
    %57 = vsyncpa [#allocation3], 1
    %58 = vsyncpa [#allocation6], 1
    %59 = vsyncpa [#allocation4], 1

</llo_original>
